<compile_context>
chip_gen: v5e
topology: v5e:2x2
jax: 0.10.0
libtpu: 0.0.40
codegen_flags: <defaults>
</compile_context>

<pallas_src>
import functools

import jax
import jax.numpy as jnp
from jax.experimental import pallas as pl
from jax.experimental.pallas import tpu as pltpu


# ------------------------------ Pallas kernel ------------------------------- #

def fused_mha_kernel(x_ref, w_in_ref, b_in_ref, w_out_ref, b_out_ref, o_ref,
                     attn_ref, *, num_heads, scaling):
    # One grid step == one batch element; x_ref is (L, E).
    L, E = x_ref.shape
    hd = E // num_heads

    x = x_ref[...].astype(jnp.bfloat16)                          # (L, E)
    w_in = w_in_ref[...].astype(jnp.bfloat16)                    # (3E, E)

    # In-projection: qkv = x @ W_in^T + b_in (contract last dims of both
    # operands -> W_in consumed untransposed; f32 accumulation).
    qkv = jax.lax.dot_general(
        x, w_in, (((1,), (1,)), ((), ())),
        preferred_element_type=jnp.float32) + b_in_ref[...]      # (L, 3E) f32

    for h in range(num_heads):                                   # static unroll (tiny)
        lo = h * hd
        hi = lo + hd
        # Scale q in f32 (matches PyTorch: query * scaling before bmm), then
        # cast MXU operands to bf16.
        q_h = (qkv[:, lo:hi] * scaling).astype(jnp.bfloat16)     # (L, hd)
        k_h = qkv[:, E + lo:E + hi].astype(jnp.bfloat16)         # (L, hd)
        v_h = qkv[:, 2 * E + lo:2 * E + hi].astype(jnp.bfloat16) # (L, hd)

        # scores = q_h @ k_h^T without materializing a transpose of K.
        s = jax.lax.dot_general(
            q_h, k_h, (((1,), (1,)), ((), ())),
            preferred_element_type=jnp.float32)                  # (L, L) f32, dense

        # Numerically stable softmax in f32; normalizer via EUP approx recip.
        m = jnp.max(s, axis=-1, keepdims=True)
        p = jnp.exp(s - m)
        p = p * pl.reciprocal(jnp.sum(p, axis=-1, keepdims=True), approx=True)

        o_h = jnp.dot(p.astype(jnp.bfloat16), v_h,
                      preferred_element_type=jnp.float32)        # (L, hd) f32

        # Stash this head's output at its lane offset; the out-projection is a
        # single full-depth GEMM after the loop.
        attn_ref[:, lo:hi] = o_h

    # Out-projection: out = attn @ W_out^T + b_out, one K=E contraction.
    attn = attn_ref[...].astype(jnp.bfloat16)                    # (L, E)
    w_out = w_out_ref[...].astype(jnp.bfloat16)                  # (E, E)
    out = jax.lax.dot_general(
        attn, w_out, (((1,), (1,)), ((), ())),
        preferred_element_type=jnp.float32) + b_out_ref[...]     # (L, E) f32
    o_ref[...] = out


def fused_mha(x_bm, w_in, b_in, w_out, b_out, *, num_heads):
    """x_bm: batch-major activations (B, L, E)."""
    B, L, E = x_bm.shape
    head_dim = E // num_heads
    scaling = float(head_dim) ** -0.5
    kernel = functools.partial(fused_mha_kernel,
                               num_heads=num_heads, scaling=scaling)
    return pl.pallas_call(
        kernel,
        out_shape=jax.ShapeDtypeStruct((B, L, E), jnp.float32),
        grid=(B,),
        in_specs=[
            # Activations: one batch element per grid step (batch dim squeezed).
            pl.BlockSpec((None, L, E), lambda b: (b, 0, 0)),
            # Weights/biases: constant index_map -> VMEM-resident across grid.
            pl.BlockSpec((3 * E, E), lambda b: (0, 0)),   # in_proj_weight
            pl.BlockSpec((1, 3 * E), lambda b: (0, 0)),   # in_proj_bias
            pl.BlockSpec((E, E), lambda b: (0, 0)),       # out_proj_weight
            pl.BlockSpec((1, E), lambda b: (0, 0)),       # out_proj_bias
        ],
        out_specs=pl.BlockSpec((None, L, E), lambda b: (b, 0, 0)),
        scratch_shapes=[pltpu.VMEM((L, E), jnp.float32)],  # per-head output slab
        compiler_params=pltpu.CompilerParams(
            dimension_semantics=("parallel",)),            # shard batch over TCs (v7x)
    )(x_bm, w_in, b_in.reshape(1, 3 * E), w_out, b_out.reshape(1, E))


# --------------------------- Module forward pass ---------------------------- #

@functools.partial(jax.jit, static_argnames=("num_heads",))
def multi_head_attention(query, in_proj_weight, in_proj_bias,
                         out_proj_weight, out_proj_bias, *, num_heads):
    """Mirrors MultiHeadAttention.forward (key_padding_mask=None, eval mode)."""
    tgt_len, bsz, embed_dim = query.shape
    assert embed_dim % num_heads == 0, "embed_dim must be divisible by num_heads"
    # Batch-major layout so the kernel grid iterates batch with dense score tiles.
    x_bm = jnp.transpose(query, (1, 0, 2))                 # (B, L, E)
    out_bm = fused_mha(x_bm, in_proj_weight, in_proj_bias,
                       out_proj_weight, out_proj_bias, num_heads=num_heads)
    return jnp.transpose(out_bm, (1, 0, 2))                # (L, B, E)


# ----------------------------- Pure-JAX reference --------------------------- #

def reference_mha(query, w_in, b_in, w_out, b_out, num_heads):
    L, B, E = query.shape
    hd = E // num_heads
    scaling = float(hd) ** -0.5
    qkv = query @ w_in.T + b_in                            # (L, B, 3E)
    q, k, v = jnp.split(qkv, 3, axis=-1)
    q = q * scaling

    def heads(t):
        return t.reshape(L, B * num_heads, hd).transpose(1, 0, 2)

    qh, kh, vh = heads(q), heads(k), heads(v)
    s = jnp.einsum('nqd,nkd->nqk', qh, kh)
    p = jax.nn.softmax(s, axis=-1)
    o = jnp.einsum('nqk,nkd->nqd', p, vh)
    o = o.transpose(1, 0, 2).reshape(L, B, E)
    return o @ w_out.T + b_out


# ------------------------------ Parameter init ------------------------------ #

def xavier_uniform(key, shape):
    fan_out, fan_in = shape
    bound = (6.0 / (fan_in + fan_out)) ** 0.5
    return jax.random.uniform(key, shape, jnp.float32, -bound, bound)


if __name__ == "__main__":
    tgt_len, bsz, embed_dim, num_heads = 8, 2, 32, 4

    root = jax.random.PRNGKey(0)
    k_q, k_w_in, k_w_out = jax.random.split(root, 3)

    query = jax.random.normal(k_q, (tgt_len, bsz, embed_dim), jnp.float32)

    # in_proj_weight: (3E, E) xavier_uniform, in_proj_bias: zeros (_reset_parameters)
    in_proj_weight = xavier_uniform(k_w_in, (3 * embed_dim, embed_dim))
    in_proj_bias = jnp.zeros((3 * embed_dim,), jnp.float32)

    # out_proj: nn.Linear(E, E); bias zeroed by _reset_parameters
    out_proj_weight = xavier_uniform(k_w_out, (embed_dim, embed_dim))
    out_proj_bias = jnp.zeros((embed_dim,), jnp.float32)

    out = multi_head_attention(query, in_proj_weight, in_proj_bias,
                               out_proj_weight, out_proj_bias,
                               num_heads=num_heads)
    jax.block_until_ready(out)
    assert out.shape == (tgt_len, bsz, embed_dim)

    ref = reference_mha(query, in_proj_weight, in_proj_bias,
                        out_proj_weight, out_proj_bias, num_heads)
    # bf16 MXU operands with f32 accumulation: expect ~1e-3-level relative error.
    max_err = float(jnp.max(jnp.abs(out - ref)))
    assert max_err < 5e-2, f"mismatch vs reference: max abs err = {max_err}"

    print("KERNEL_OK")
</pallas_src>

<mosaic_0001>
module attributes {stable_mosaic.version = 11 : i64} {
  func.func @fused_mha_kernel(%arg0: i32, %arg1: memref<1x8x32xf32, #tpu.memory_space<vmem>>, %arg2: memref<96x32xf32, #tpu.memory_space<vmem>>, %arg3: memref<1x96xf32, #tpu.memory_space<vmem>>, %arg4: memref<32x32xf32, #tpu.memory_space<vmem>>, %arg5: memref<1x32xf32, #tpu.memory_space<vmem>>, %arg6: memref<1x8x32xf32, #tpu.memory_space<vmem>>, %arg7: memref<8x32xf32, #tpu.memory_space<vmem>>) attributes {dimension_semantics = [#tpu.dimension_semantics<parallel>], iteration_bounds = array<i64: 2>, scalar_prefetch = 0 : i64, scratch_operands = 1 : i64, tpu.core_type = #tpu.core_type<tc>, window_params = [{transform_indices = @transform_0, window_bounds = array<i64: 1, 8, 32>}, {pipeline_mode = #tpu.pipeline_mode<synchronous>, transform_indices = @transform_1, window_bounds = array<i64: 96, 32>}, {pipeline_mode = #tpu.pipeline_mode<synchronous>, transform_indices = @transform_2, window_bounds = array<i64: 1, 96>}, {pipeline_mode = #tpu.pipeline_mode<synchronous>, transform_indices = @transform_3, window_bounds = array<i64: 32, 32>}, {pipeline_mode = #tpu.pipeline_mode<synchronous>, transform_indices = @transform_4, window_bounds = array<i64: 1, 32>}, {transform_indices = @transform_5, window_bounds = array<i64: 1, 8, 32>}]} {
    %c0 = arith.constant 0 : index
    %c0_0 = arith.constant 0 : index
    %c0_1 = arith.constant 0 : index
    %0 = vector.load %arg1[%c0, %c0_0, %c0_1] : memref<1x8x32xf32, #tpu.memory_space<vmem>>, vector<1x8x32xf32>
    %1 = vector.shape_cast %0 : vector<1x8x32xf32> to vector<8x32xf32>
    %2 = arith.truncf %1 : vector<8x32xf32> to vector<8x32xbf16>
    %c0_2 = arith.constant 0 : index
    %c0_3 = arith.constant 0 : index
    %3 = vector.load %arg2[%c0_2, %c0_3] : memref<96x32xf32, #tpu.memory_space<vmem>>, vector<96x32xf32>
    %4 = arith.truncf %3 : vector<96x32xf32> to vector<96x32xbf16>
    %cst = arith.constant dense<0.000000e+00> : vector<8x96xf32>
    %5 = tpu.matmul %2, %4, %cst {dimension_numbers = #tpu.dot_dimension_numbers<[1], [1], [0], [0], [0, 0, 1, 0], [], []>} : vector<8x32xbf16>, vector<96x32xbf16>, vector<8x96xf32> -> vector<8x96xf32>
    %c0_4 = arith.constant 0 : index
    %c0_5 = arith.constant 0 : index
    %6 = vector.load %arg3[%c0_4, %c0_5] : memref<1x96xf32, #tpu.memory_space<vmem>>, vector<1x96xf32>
    %7 = vector.broadcast %6 : vector<1x96xf32> to vector<8x96xf32>
    %8 = arith.addf %5, %7 : vector<8x96xf32>
    %9 = vector.extract_strided_slice %8 {offsets = [0, 0], sizes = [8, 8], strides = [1, 1]} : vector<8x96xf32> to vector<8x8xf32>
    %cst_6 = arith.constant 0.353553385 : f32
    %10 = vector.broadcast %cst_6 : f32 to vector<8x8xf32>
    %11 = arith.mulf %9, %10 : vector<8x8xf32>
    %12 = arith.truncf %11 : vector<8x8xf32> to vector<8x8xbf16>
    %13 = vector.extract_strided_slice %8 {offsets = [0, 32], sizes = [8, 8], strides = [1, 1]} : vector<8x96xf32> to vector<8x8xf32>
    %14 = arith.truncf %13 : vector<8x8xf32> to vector<8x8xbf16>
    %15 = vector.extract_strided_slice %8 {offsets = [0, 64], sizes = [8, 8], strides = [1, 1]} : vector<8x96xf32> to vector<8x8xf32>
    %16 = arith.truncf %15 : vector<8x8xf32> to vector<8x8xbf16>
    %cst_7 = arith.constant dense<0.000000e+00> : vector<8x8xf32>
    %17 = tpu.matmul %12, %14, %cst_7 {dimension_numbers = #tpu.dot_dimension_numbers<[1], [1], [0], [0], [0, 0, 1, 0], [], []>} : vector<8x8xbf16>, vector<8x8xbf16>, vector<8x8xf32> -> vector<8x8xf32>
    %cst_8 = arith.constant dense<0xFF800000> : vector<8xf32>
    %18 = vector.multi_reduction <maximumf>, %17, %cst_8 [1] : vector<8x8xf32> to vector<8xf32>
    %19 = vector.shape_cast %18 : vector<8xf32> to vector<8x1xf32>
    %20 = vector.broadcast %19 : vector<8x1xf32> to vector<8x8xf32>
    %21 = arith.subf %17, %20 : vector<8x8xf32>
    %22 = math.exp %21 : vector<8x8xf32>
    %cst_9 = arith.constant dense<0.000000e+00> : vector<8xf32>
    %23 = vector.multi_reduction <add>, %22, %cst_9 [1] : vector<8x8xf32> to vector<8xf32>
    %24 = vector.shape_cast %23 : vector<8xf32> to vector<8x1xf32>
    %25 = tpu.reciprocal %24 {approx = true} : vector<8x1xf32> -> vector<8x1xf32>
    %26 = vector.broadcast %25 : vector<8x1xf32> to vector<8x8xf32>
    %27 = arith.mulf %22, %26 : vector<8x8xf32>
    %28 = arith.truncf %27 : vector<8x8xf32> to vector<8x8xbf16>
    %cst_10 = arith.constant dense<0.000000e+00> : vector<8x8xf32>
    %29 = tpu.matmul %28, %16, %cst_10 {dimension_numbers = #tpu.dot_dimension_numbers<[1], [0], [0], [1], [0, 0, 1, 1], [], []>} : vector<8x8xbf16>, vector<8x8xbf16>, vector<8x8xf32> -> vector<8x8xf32>
    %c0_11 = arith.constant 0 : index
    %c0_12 = arith.constant 0 : index
    %30 = vector.load %arg7[%c0_11, %c0_12] : memref<8x32xf32, #tpu.memory_space<vmem>>, vector<8x8xf32>
    tpu.vector_store %arg7[%c0_11, %c0_12], %29 {strides = array<i32>} : memref<8x32xf32, #tpu.memory_space<vmem>>, vector<8x8xf32>,
    %31 = vector.extract_strided_slice %8 {offsets = [0, 8], sizes = [8, 8], strides = [1, 1]} : vector<8x96xf32> to vector<8x8xf32>
    %cst_13 = arith.constant 0.353553385 : f32
    %32 = vector.broadcast %cst_13 : f32 to vector<8x8xf32>
    %33 = arith.mulf %31, %32 : vector<8x8xf32>
    %34 = arith.truncf %33 : vector<8x8xf32> to vector<8x8xbf16>
    %35 = vector.extract_strided_slice %8 {offsets = [0, 40], sizes = [8, 8], strides = [1, 1]} : vector<8x96xf32> to vector<8x8xf32>
    %36 = arith.truncf %35 : vector<8x8xf32> to vector<8x8xbf16>
    %37 = vector.extract_strided_slice %8 {offsets = [0, 72], sizes = [8, 8], strides = [1, 1]} : vector<8x96xf32> to vector<8x8xf32>
    %38 = arith.truncf %37 : vector<8x8xf32> to vector<8x8xbf16>
    %cst_14 = arith.constant dense<0.000000e+00> : vector<8x8xf32>
    %39 = tpu.matmul %34, %36, %cst_14 {dimension_numbers = #tpu.dot_dimension_numbers<[1], [1], [0], [0], [0, 0, 1, 0], [], []>} : vector<8x8xbf16>, vector<8x8xbf16>, vector<8x8xf32> -> vector<8x8xf32>
    %cst_15 = arith.constant dense<0xFF800000> : vector<8xf32>
    %40 = vector.multi_reduction <maximumf>, %39, %cst_15 [1] : vector<8x8xf32> to vector<8xf32>
    %41 = vector.shape_cast %40 : vector<8xf32> to vector<8x1xf32>
    %42 = vector.broadcast %41 : vector<8x1xf32> to vector<8x8xf32>
    %43 = arith.subf %39, %42 : vector<8x8xf32>
    %44 = math.exp %43 : vector<8x8xf32>
    %cst_16 = arith.constant dense<0.000000e+00> : vector<8xf32>
    %45 = vector.multi_reduction <add>, %44, %cst_16 [1] : vector<8x8xf32> to vector<8xf32>
    %46 = vector.shape_cast %45 : vector<8xf32> to vector<8x1xf32>
    %47 = tpu.reciprocal %46 {approx = true} : vector<8x1xf32> -> vector<8x1xf32>
    %48 = vector.broadcast %47 : vector<8x1xf32> to vector<8x8xf32>
    %49 = arith.mulf %44, %48 : vector<8x8xf32>
    %50 = arith.truncf %49 : vector<8x8xf32> to vector<8x8xbf16>
    %cst_17 = arith.constant dense<0.000000e+00> : vector<8x8xf32>
    %51 = tpu.matmul %50, %38, %cst_17 {dimension_numbers = #tpu.dot_dimension_numbers<[1], [0], [0], [1], [0, 0, 1, 1], [], []>} : vector<8x8xbf16>, vector<8x8xbf16>, vector<8x8xf32> -> vector<8x8xf32>
    %c0_18 = arith.constant 0 : index
    %c8 = arith.constant 8 : index
    %52 = vector.load %arg7[%c0_18, %c8] : memref<8x32xf32, #tpu.memory_space<vmem>>, vector<8x8xf32>
    tpu.vector_store %arg7[%c0_18, %c8], %51 {strides = array<i32>} : memref<8x32xf32, #tpu.memory_space<vmem>>, vector<8x8xf32>,
    %53 = vector.extract_strided_slice %8 {offsets = [0, 16], sizes = [8, 8], strides = [1, 1]} : vector<8x96xf32> to vector<8x8xf32>
    %cst_19 = arith.constant 0.353553385 : f32
    %54 = vector.broadcast %cst_19 : f32 to vector<8x8xf32>
    %55 = arith.mulf %53, %54 : vector<8x8xf32>
    %56 = arith.truncf %55 : vector<8x8xf32> to vector<8x8xbf16>
    %57 = vector.extract_strided_slice %8 {offsets = [0, 48], sizes = [8, 8], strides = [1, 1]} : vector<8x96xf32> to vector<8x8xf32>
    %58 = arith.truncf %57 : vector<8x8xf32> to vector<8x8xbf16>
    %59 = vector.extract_strided_slice %8 {offsets = [0, 80], sizes = [8, 8], strides = [1, 1]} : vector<8x96xf32> to vector<8x8xf32>
    %60 = arith.truncf %59 : vector<8x8xf32> to vector<8x8xbf16>
    %cst_20 = arith.constant dense<0.000000e+00> : vector<8x8xf32>
    %61 = tpu.matmul %56, %58, %cst_20 {dimension_numbers = #tpu.dot_dimension_numbers<[1], [1], [0], [0], [0, 0, 1, 0], [], []>} : vector<8x8xbf16>, vector<8x8xbf16>, vector<8x8xf32> -> vector<8x8xf32>
    %cst_21 = arith.constant dense<0xFF800000> : vector<8xf32>
    %62 = vector.multi_reduction <maximumf>, %61, %cst_21 [1] : vector<8x8xf32> to vector<8xf32>
    %63 = vector.shape_cast %62 : vector<8xf32> to vector<8x1xf32>
    %64 = vector.broadcast %63 : vector<8x1xf32> to vector<8x8xf32>
    %65 = arith.subf %61, %64 : vector<8x8xf32>
    %66 = math.exp %65 : vector<8x8xf32>
    %cst_22 = arith.constant dense<0.000000e+00> : vector<8xf32>
    %67 = vector.multi_reduction <add>, %66, %cst_22 [1] : vector<8x8xf32> to vector<8xf32>
    %68 = vector.shape_cast %67 : vector<8xf32> to vector<8x1xf32>
    %69 = tpu.reciprocal %68 {approx = true} : vector<8x1xf32> -> vector<8x1xf32>
    %70 = vector.broadcast %69 : vector<8x1xf32> to vector<8x8xf32>
    %71 = arith.mulf %66, %70 : vector<8x8xf32>
    %72 = arith.truncf %71 : vector<8x8xf32> to vector<8x8xbf16>
    %cst_23 = arith.constant dense<0.000000e+00> : vector<8x8xf32>
    %73 = tpu.matmul %72, %60, %cst_23 {dimension_numbers = #tpu.dot_dimension_numbers<[1], [0], [0], [1], [0, 0, 1, 1], [], []>} : vector<8x8xbf16>, vector<8x8xbf16>, vector<8x8xf32> -> vector<8x8xf32>
    %c0_24 = arith.constant 0 : index
    %c16 = arith.constant 16 : index
    %74 = vector.load %arg7[%c0_24, %c16] : memref<8x32xf32, #tpu.memory_space<vmem>>, vector<8x8xf32>
    tpu.vector_store %arg7[%c0_24, %c16], %73 {strides = array<i32>} : memref<8x32xf32, #tpu.memory_space<vmem>>, vector<8x8xf32>,
    %75 = vector.extract_strided_slice %8 {offsets = [0, 24], sizes = [8, 8], strides = [1, 1]} : vector<8x96xf32> to vector<8x8xf32>
    %cst_25 = arith.constant 0.353553385 : f32
    %76 = vector.broadcast %cst_25 : f32 to vector<8x8xf32>
    %77 = arith.mulf %75, %76 : vector<8x8xf32>
    %78 = arith.truncf %77 : vector<8x8xf32> to vector<8x8xbf16>
    %79 = vector.extract_strided_slice %8 {offsets = [0, 56], sizes = [8, 8], strides = [1, 1]} : vector<8x96xf32> to vector<8x8xf32>
    %80 = arith.truncf %79 : vector<8x8xf32> to vector<8x8xbf16>
    %81 = vector.extract_strided_slice %8 {offsets = [0, 88], sizes = [8, 8], strides = [1, 1]} : vector<8x96xf32> to vector<8x8xf32>
    %82 = arith.truncf %81 : vector<8x8xf32> to vector<8x8xbf16>
    %cst_26 = arith.constant dense<0.000000e+00> : vector<8x8xf32>
    %83 = tpu.matmul %78, %80, %cst_26 {dimension_numbers = #tpu.dot_dimension_numbers<[1], [1], [0], [0], [0, 0, 1, 0], [], []>} : vector<8x8xbf16>, vector<8x8xbf16>, vector<8x8xf32> -> vector<8x8xf32>
    %cst_27 = arith.constant dense<0xFF800000> : vector<8xf32>
    %84 = vector.multi_reduction <maximumf>, %83, %cst_27 [1] : vector<8x8xf32> to vector<8xf32>
    %85 = vector.shape_cast %84 : vector<8xf32> to vector<8x1xf32>
    %86 = vector.broadcast %85 : vector<8x1xf32> to vector<8x8xf32>
    %87 = arith.subf %83, %86 : vector<8x8xf32>
    %88 = math.exp %87 : vector<8x8xf32>
    %cst_28 = arith.constant dense<0.000000e+00> : vector<8xf32>
    %89 = vector.multi_reduction <add>, %88, %cst_28 [1] : vector<8x8xf32> to vector<8xf32>
    %90 = vector.shape_cast %89 : vector<8xf32> to vector<8x1xf32>
    %91 = tpu.reciprocal %90 {approx = true} : vector<8x1xf32> -> vector<8x1xf32>
    %92 = vector.broadcast %91 : vector<8x1xf32> to vector<8x8xf32>
    %93 = arith.mulf %88, %92 : vector<8x8xf32>
    %94 = arith.truncf %93 : vector<8x8xf32> to vector<8x8xbf16>
    %cst_29 = arith.constant dense<0.000000e+00> : vector<8x8xf32>
    %95 = tpu.matmul %94, %82, %cst_29 {dimension_numbers = #tpu.dot_dimension_numbers<[1], [0], [0], [1], [0, 0, 1, 1], [], []>} : vector<8x8xbf16>, vector<8x8xbf16>, vector<8x8xf32> -> vector<8x8xf32>
    %c0_30 = arith.constant 0 : index
    %c24 = arith.constant 24 : index
    %96 = vector.load %arg7[%c0_30, %c24] : memref<8x32xf32, #tpu.memory_space<vmem>>, vector<8x8xf32>
    tpu.vector_store %arg7[%c0_30, %c24], %95 {strides = array<i32>} : memref<8x32xf32, #tpu.memory_space<vmem>>, vector<8x8xf32>,
    %c0_31 = arith.constant 0 : index
    %c0_32 = arith.constant 0 : index
    %97 = vector.load %arg7[%c0_31, %c0_32] : memref<8x32xf32, #tpu.memory_space<vmem>>, vector<8x32xf32>
    %98 = arith.truncf %97 : vector<8x32xf32> to vector<8x32xbf16>
    %c0_33 = arith.constant 0 : index
    %c0_34 = arith.constant 0 : index
    %99 = vector.load %arg4[%c0_33, %c0_34] : memref<32x32xf32, #tpu.memory_space<vmem>>, vector<32x32xf32>
    %100 = arith.truncf %99 : vector<32x32xf32> to vector<32x32xbf16>
    %cst_35 = arith.constant dense<0.000000e+00> : vector<8x32xf32>
    %101 = tpu.matmul %98, %100, %cst_35 {dimension_numbers = #tpu.dot_dimension_numbers<[1], [1], [0], [0], [0, 0, 1, 0], [], []>} : vector<8x32xbf16>, vector<32x32xbf16>, vector<8x32xf32> -> vector<8x32xf32>
    %c0_36 = arith.constant 0 : index
    %c0_37 = arith.constant 0 : index
    %102 = vector.load %arg5[%c0_36, %c0_37] : memref<1x32xf32, #tpu.memory_space<vmem>>, vector<1x32xf32>
    %103 = vector.broadcast %102 : vector<1x32xf32> to vector<8x32xf32>
    %104 = arith.addf %101, %103 : vector<8x32xf32>
    %c0_38 = arith.constant 0 : index
    %c0_39 = arith.constant 0 : index
    %c0_40 = arith.constant 0 : index
    %105 = vector.load %arg6[%c0_38, %c0_39, %c0_40] : memref<1x8x32xf32, #tpu.memory_space<vmem>>, vector<1x8x32xf32>
    %106 = vector.shape_cast %105 : vector<1x8x32xf32> to vector<8x32xf32>
    %107 = vector.shape_cast %104 : vector<8x32xf32> to vector<1x8x32xf32>
    tpu.vector_store %arg6[%c0_38, %c0_39, %c0_40], %107 {strides = array<i32>} : memref<1x8x32xf32, #tpu.memory_space<vmem>>, vector<1x8x32xf32>,
    return
  }
  func.func @transform_0(%arg0: i32) -> (i32, i32, i32) {
    %c0_i32 = arith.constant 0 : i32
    %c0_i32_0 = arith.constant 0 : i32
    %c0_i32_1 = arith.constant 0 : i32
    return %arg0, %c0_i32, %c0_i32_0 : i32, i32, i32
  }
  func.func @transform_1(%arg0: i32) -> (i32, i32) {
    %c0_i32 = arith.constant 0 : i32
    %c0_i32_0 = arith.constant 0 : i32
    %c0_i32_1 = arith.constant 0 : i32
    return %c0_i32, %c0_i32_0 : i32, i32
  }
  func.func @transform_2(%arg0: i32) -> (i32, i32) {
    %c0_i32 = arith.constant 0 : i32
    %c0_i32_0 = arith.constant 0 : i32
    %c0_i32_1 = arith.constant 0 : i32
    return %c0_i32, %c0_i32_0 : i32, i32
  }
  func.func @transform_3(%arg0: i32) -> (i32, i32) {
    %c0_i32 = arith.constant 0 : i32
    %c0_i32_0 = arith.constant 0 : i32
    %c0_i32_1 = arith.constant 0 : i32
    return %c0_i32, %c0_i32_0 : i32, i32
  }
  func.func @transform_4(%arg0: i32) -> (i32, i32) {
    %c0_i32 = arith.constant 0 : i32
    %c0_i32_0 = arith.constant 0 : i32
    %c0_i32_1 = arith.constant 0 : i32
    return %c0_i32, %c0_i32_0 : i32, i32
  }
  func.func @transform_5(%arg0: i32) -> (i32, i32, i32) {
    %c0_i32 = arith.constant 0 : i32
    %c0_i32_0 = arith.constant 0 : i32
    %c0_i32_1 = arith.constant 0 : i32
    return %arg0, %c0_i32, %c0_i32_0 : i32, i32, i32
  }
}

</mosaic_0001>

<llo_original>
// kernel: multi_head_attention.1
$region0: #{multi_head_attention.1}
  #allocation0 [shape = 'u32[]', space=smem, size = 0x4, offset = 0x4, fixed_abs, tag = 'smem constant byte address 0x4 - core index']
  #allocation1 [shape = 'u32[72,128]{1,0:T(1,128)}', space=vmem, size = 0x9000, scoped, tag = 'internal scratch']
  #allocation2 [shape = 'f32[8,32]{1,0:T(8,128)}', space=vmem, size = 0x1000, scoped, tag = 'scratch operand']
  %s0 = inlined_call_operand.vmem [shape: f32[2,8,32], index: 0, kind: input, shape index: {}]
  %s1 = inlined_call_operand.vmem [shape: f32[96,32], index: 1, kind: input, shape index: {}]
  %s2 = inlined_call_operand.vmem [shape: f32[1,96], index: 2, kind: input, shape index: {}]
  %s3 = inlined_call_operand.vmem [shape: f32[32,32], index: 3, kind: input, shape index: {}]
  %s4 = inlined_call_operand.vmem [shape: f32[1,32], index: 4, kind: input, shape index: {}]
  %s5 = inlined_call_operand.vmem [shape: f32[2,8,32], index: 5, kind: output, shape index: {}]
  %s6 = sld [smem:[#allocation0]]
  $region53: #{multi_head_attention.1} parent=0
    _
  %s8 = ssub.s32 1, %s6
  %s9 = scalar_select 0, %s8, %s6
  loop: start=0, step=1, limit=4
  $region2: #{multi_head_attention.1} parent=0 // loop_pre_header
    _
  $region3: #{multi_head_attention.1} parent=0 // loop_header
    %s11 = sphi 0, %s15
    %p12 = scmp.ge.s32.totalorder %s11, 4
    %s21 = sphi 0, %s23
    %s24 = sphi 0, %s21
    %s25 = sphi 0, %s24
    %s41 = sphi 0, %s25
    %s45 = sphi 0, %s45
    %s47 = sphi 0, %s45
    %s48 = sphi 0, %s47
    %s62 = sphi 0, %s48
    %s66 = sphi 0, %s66
    %s68 = sphi 0, %s66
    %s69 = sphi 0, %s68
    %s83 = sphi 0, %s69
    %s87 = sphi 0, %s87
    %s89 = sphi 0, %s87
    %s90 = sphi 0, %s89
    %s104 = sphi 0, %s90
    %s108 = sphi 0, %s108
    %s110 = sphi 0, %s108
    %s111 = sphi 0, %s110
    %s125 = sphi 0, %s111
    %s131 = sphi 0, %s133
    %s134 = sphi 0, %s131
    %s135 = sphi 0, %s134
    %s151 = sphi 0, %s135
  $region4: #{multi_head_attention.1} parent=0 // loop_header_branch
    %14 = sbr.rel (%p12) target = $region8
  $region5: #{multi_head_attention.1} parent=0 // loop_body
    %s16 = ssub.s32 %s11, 1
    %s17 = ssub.s32 %s11, 2
    %s18 = sadd.s32 %s11, 1
    %s19 = ssub.s32 %s11, %s18
    %p20 = scmp.eq.s32.totalorder %s19, 0
    %s22 = sadd.s32 %s21, 1
    %s23 = scalar_select %p20, %s21, %s22
    %p26 = pneg %p20
    %p27 = scmp.eq.s32.totalorder %s11, 1
    %p28 = por %p26, %p27
    %p29 = scmp.ne.s32.totalorder %s21, %s24
    %p30 = scmp.eq.s32.totalorder %s11, 0
    %p31 = por %p29, %p30
    %p32 = scmp.ne.s32.totalorder %s21, %s24
    %p33 = scmp.eq.s32.totalorder %s16, 1
    %p34 = por %p32, %p33
    %p35 = scmp.ne.s32.totalorder %s24, %s25
    %p36 = scmp.eq.s32.totalorder %s16, 0
    %p37 = por %p35, %p36
    %p38 = scmp.ne.s32.totalorder %s24, %s25
    %p39 = scmp.eq.s32.totalorder %s17, 1
    %p40 = por %p38, %p39
    %p42 = scmp.ne.s32.totalorder %s25, %s41
    %p43 = scmp.eq.s32.totalorder %s17, 0
    %p44 = por %p42, %p43
    %s46 = sadd.s32 %s45, 1
    %p49 = scmp.eq.s32.totalorder %s11, 1
    %p50 = scmp.ne.s32.totalorder %s45, %s47
    %p51 = scmp.eq.s32.totalorder %s11, 0
    %p52 = por %p50, %p51
    %p53 = scmp.ne.s32.totalorder %s45, %s47
    %p54 = scmp.eq.s32.totalorder %s16, 1
    %p55 = por %p53, %p54
    %p56 = scmp.ne.s32.totalorder %s47, %s48
    %p57 = scmp.eq.s32.totalorder %s16, 0
    %p58 = por %p56, %p57
    %p59 = scmp.ne.s32.totalorder %s47, %s48
    %p60 = scmp.eq.s32.totalorder %s17, 1
    %p61 = por %p59, %p60
    %p63 = scmp.ne.s32.totalorder %s48, %s62
    %p64 = scmp.eq.s32.totalorder %s17, 0
    %p65 = por %p63, %p64
    %s67 = sadd.s32 %s66, 1
    %p70 = scmp.eq.s32.totalorder %s11, 1
    %p71 = scmp.ne.s32.totalorder %s66, %s68
    %p72 = scmp.eq.s32.totalorder %s11, 0
    %p73 = por %p71, %p72
    %p74 = scmp.ne.s32.totalorder %s66, %s68
    %p75 = scmp.eq.s32.totalorder %s16, 1
    %p76 = por %p74, %p75
    %p77 = scmp.ne.s32.totalorder %s68, %s69
    %p78 = scmp.eq.s32.totalorder %s16, 0
    %p79 = por %p77, %p78
    %p80 = scmp.ne.s32.totalorder %s68, %s69
    %p81 = scmp.eq.s32.totalorder %s17, 1
    %p82 = por %p80, %p81
    %p84 = scmp.ne.s32.totalorder %s69, %s83
    %p85 = scmp.eq.s32.totalorder %s17, 0
    %p86 = por %p84, %p85
    %s88 = sadd.s32 %s87, 1
    %p91 = scmp.eq.s32.totalorder %s11, 1
    %p92 = scmp.ne.s32.totalorder %s87, %s89
    %p93 = scmp.eq.s32.totalorder %s11, 0
    %p94 = por %p92, %p93
    %p95 = scmp.ne.s32.totalorder %s87, %s89
    %p96 = scmp.eq.s32.totalorder %s16, 1
    %p97 = por %p95, %p96
    %p98 = scmp.ne.s32.totalorder %s89, %s90
    %p99 = scmp.eq.s32.totalorder %s16, 0
    %p100 = por %p98, %p99
    %p101 = scmp.ne.s32.totalorder %s89, %s90
    %p102 = scmp.eq.s32.totalorder %s17, 1
    %p103 = por %p101, %p102
    %p105 = scmp.ne.s32.totalorder %s90, %s104
    %p106 = scmp.eq.s32.totalorder %s17, 0
    %p107 = por %p105, %p106
    %s109 = sadd.s32 %s108, 1
    %p112 = scmp.eq.s32.totalorder %s11, 1
    %p113 = scmp.ne.s32.totalorder %s108, %s110
    %p114 = scmp.eq.s32.totalorder %s11, 0
    %p115 = por %p113, %p114
    %p116 = scmp.ne.s32.totalorder %s108, %s110
    %p117 = scmp.eq.s32.totalorder %s16, 1
    %p118 = por %p116, %p117
    %p119 = scmp.ne.s32.totalorder %s110, %s111
    %p120 = scmp.eq.s32.totalorder %s16, 0
    %p121 = por %p119, %p120
    %p122 = scmp.ne.s32.totalorder %s110, %s111
    %p123 = scmp.eq.s32.totalorder %s17, 1
    %p124 = por %p122, %p123
    %p126 = scmp.ne.s32.totalorder %s111, %s125
    %p127 = scmp.eq.s32.totalorder %s17, 0
    %p128 = por %p126, %p127
    %s129 = ssub.s32 %s11, %s18
    %p130 = scmp.eq.s32.totalorder %s129, 0
    %s132 = sadd.s32 %s131, 1
    %s133 = scalar_select %p130, %s131, %s132
    %p136 = pneg %p130
    %p137 = scmp.eq.s32.totalorder %s11, 1
    %p138 = por %p136, %p137
    %p139 = scmp.ne.s32.totalorder %s131, %s134
    %p140 = scmp.eq.s32.totalorder %s11, 0
    %p141 = por %p139, %p140
    %p142 = scmp.ne.s32.totalorder %s131, %s134
    %p143 = scmp.eq.s32.totalorder %s16, 1
    %p144 = por %p142, %p143
    %p145 = scmp.ne.s32.totalorder %s134, %s135
    %p146 = scmp.eq.s32.totalorder %s16, 0
    %p147 = por %p145, %p146
    %p148 = scmp.ne.s32.totalorder %s134, %s135
    %p149 = scmp.eq.s32.totalorder %s17, 1
    %p150 = por %p148, %p149
    %p152 = scmp.ne.s32.totalorder %s135, %s151
    %p153 = scmp.eq.s32.totalorder %s17, 0
    %p154 = por %p152, %p153
    %p155 = scmp.le.s32.totalorder 1, %s11
    %p156 = scmp.lt.s32.totalorder %s11, 3
    %p157 = pnand %p155, %p156
    %p158 = pneg %p157
    // Predicated region
    $region9: #{multi_head_attention.1} parent=5 // pred_check
      _
    $region10: #{multi_head_attention.1} parent=5 // pred_check_branch
      %160 = sbr.rel (%p157) target = $region12
    $region11: #{multi_head_attention.1} parent=5 // pred_region
      %s161 = ssub.s32 %s11, 1
      // Predicated region
      $region13: #{multi_head_attention.1} parent=11 // pred_check
        %p162 = pneg %p58
      $region14: #{multi_head_attention.1} parent=11 // pred_check_branch
        %164 = sbr.rel (%p162) target = $region16
      $region15: #{multi_head_attention.1} parent=11 // pred_region
        _
      $region16: #{multi_head_attention.1} parent=11 // pred_fallthru
        _
      // Predicated region
      $region17: #{multi_head_attention.1} parent=11 // pred_check
        %p165 = pneg %p79
      $region18: #{multi_head_attention.1} parent=11 // pred_check_branch
        %167 = sbr.rel (%p165) target = $region20
      $region19: #{multi_head_attention.1} parent=11 // pred_region
        _
      $region20: #{multi_head_attention.1} parent=11 // pred_fallthru
        _
      // Predicated region
      $region21: #{multi_head_attention.1} parent=11 // pred_check
        %p168 = pneg %p100
      $region22: #{multi_head_attention.1} parent=11 // pred_check_branch
        %170 = sbr.rel (%p168) target = $region24
      $region23: #{multi_head_attention.1} parent=11 // pred_region
        _
      $region24: #{multi_head_attention.1} parent=11 // pred_fallthru
        _
      // Predicated region
      $region25: #{multi_head_attention.1} parent=11 // pred_check
        %p171 = pneg %p121
      $region26: #{multi_head_attention.1} parent=11 // pred_check_branch
        %173 = sbr.rel (%p171) target = $region28
      $region27: #{multi_head_attention.1} parent=11 // pred_region
        _
      $region28: #{multi_head_attention.1} parent=11 // pred_fallthru
        _
    $region12: #{multi_head_attention.1} parent=5 // pred_fallthru
      _
    %p174 = scmp.lt.s32.totalorder %s11, 2
    // Predicated region
    $region29: #{multi_head_attention.1} parent=5 // pred_check
      %p175 = pneg %p174
    $region30: #{multi_head_attention.1} parent=5 // pred_check_branch
      %177 = sbr.rel (%p175) target = $region32
    $region31: #{multi_head_attention.1} parent=5 // pred_region
      // Predicated region
      $region33: #{multi_head_attention.1} parent=31 // pred_check
        %p178 = pneg %p31
      $region34: #{multi_head_attention.1} parent=31 // pred_check_branch
        %180 = sbr.rel (%p178) target = $region36
      $region35: #{multi_head_attention.1} parent=31 // pred_region
        %p181 = scmp.lt.s32.totalorder %s11, 1
        %s182 = scalar_select %p181, %s11, 1
        %s183 = smul.addr %s182, 8
        %s184 = scalar_lea.vmem %s0, %s183
      $region36: #{multi_head_attention.1} parent=31 // pred_fallthru
        _
    $region32: #{multi_head_attention.1} parent=5 // pred_fallthru
      _
    %p185 = scmp.le.s32.totalorder 1, %s11
    %p186 = scmp.lt.s32.totalorder %s11, 3
    %p187 = pnand %p185, %p186
    %p188 = pneg %p187
    // Predicated region
    $region37: #{multi_head_attention.1} parent=5 // pred_check
      _
    $region38: #{multi_head_attention.1} parent=5 // pred_check_branch
      %190 = sbr.rel (%p187) target = $region40
    $region39: #{multi_head_attention.1} parent=5 // pred_region
      %s191 = ssub.s32 %s11, 1
      %p192 = scmp.lt.s32.totalorder %s16, 1
      %s193 = scalar_select %p192, %s16, 1
      %s194 = smul.addr %s193, 8
      %s195 = scalar_lea.vmem %s0, %s194
      %p196 = pneg %p37
      %p197 = pneg %p34
      %p198 = pneg %p58
      %p199 = pneg %p55
      %p200 = pneg %p79
      %p201 = pneg %p76
      %p202 = pneg %p100
      %p203 = pneg %p97
      %p204 = pneg %p121
      %p205 = pneg %p118
      %p206 = pneg %p147
      %p207 = pneg %p144
      %p208 = scmp.lt.s32.totalorder %s16, 1
      %s209 = scalar_select %p208, %s16, 1
      %s210 = smul.addr %s209, 8
      %s211 = scalar_lea.vmem %s5, %s210
      %p212 = scmp.lt.s32.totalorder %s16, 1
      %s213 = scalar_select %p212, %s16, 1
      %s214 = smul.addr %s213, 8
      %s215 = scalar_lea.vmem %s0, %s214
      %p216 = scmp.lt.s32.totalorder %s16, 1
      %s217 = scalar_select %p216, %s16, 1
      %s218 = smul.addr %s217, 8
      %s219 = scalar_lea.vmem %s5, %s218
      %v221 = vld [vmem:[%s215] sm:$0xff]
      %v222 = vpack.c.bf16 %v221, %v221
      %v223 = vld [vmem:[%s1] sm:$0xff]
      %v224 = vld [vmem:[%s1 + $0x8] sm:$0xff]
      %v225 = vld [vmem:[%s1 + $0x10] sm:$0xff]
      %v226 = vld [vmem:[%s1 + $0x18] sm:$0xff]
      %v227 = vld [vmem:[%s1 + $0x20] sm:$0xff]
      %v228 = vld [vmem:[%s1 + $0x28] sm:$0xff]
      %v229 = vld [vmem:[%s1 + $0x30] sm:$0xff]
      %v230 = vld [vmem:[%s1 + $0x38] sm:$0xff]
      %v231 = vld [vmem:[%s1 + $0x40] sm:$0xff]
      %v232 = vld [vmem:[%s1 + $0x48] sm:$0xff]
      %v233 = vld [vmem:[%s1 + $0x50] sm:$0xff]
      %v234 = vld [vmem:[%s1 + $0x58] sm:$0xff]
      %v235 = vpack.c.bf16 %v224, %v223
      %v236 = vpack.c.bf16 %v226, %v225
      %v237 = vpack.c.bf16 %v228, %v227
      %v238 = vpack.c.bf16 %v230, %v229
      %v239 = vpack.c.bf16 %v232, %v231
      %v240 = vpack.c.bf16 %v234, %v233
      %v241 = vld [vmem:[%s2] sm:$0x1]
      %v243 = vperm.slane %v241, 0
      %vm245 = vcmask 261120
      %v247 = vsel %vm245, %v222, 0
      %v250 = vsel %vm245, %v235, 0
      %v253 = vsel %vm245, %v236, 0
      %v256 = vsel %vm245, %v237, 0
      %v259 = vsel %vm245, %v238, 0
      %v262 = vsel %vm245, %v239, 0
      %v265 = vsel %vm245, %v240, 0
      %267 = vmatpush.bf16.xpose.msra.mxu0 0
      %268 = vmatpush.bf16.xpose.msra.mxu0 0
      %269 = vmatpush.bf16.xpose.msra.mxu0 %v265
      %270 = vmatpush.bf16.xpose.msra.mxu0 %v262
      %271 = vmatpush.bf16.xpose.msra.mxu0 %v259
      %272 = vmatpush.bf16.xpose.msra.mxu0 %v256
      %273 = vmatpush.bf16.xpose.msra.mxu0 %v253
      %274 = vmatpush.bf16.xpose.msra.mxu0 %v250
      %275 = vmatmul.bf16.gmra.mxu0 %v247
      %v276 = vpop.f32.mrf.mxu0
      %v277 = vadd.f32 %v243, %v276
      %v278 = vpop.f32.mrf.mxu0
      %279 = vdwg.mxu0
      %v280 = vmul.f32 %v277, 0.35355338
      %v281 = vpack.c.bf16 %v280, %v280
      %v282 = vpack.c.bf16 %v277, %v277
      %284 = vrot.lane.b32.xlu0 %v282, 96
      %v285 = vpop.permute.xlu0 %284
      %vm286 = vcmask 64512
      %v288 = vsel %vm286, %v281, 0
      %v291 = vsel %vm286, %v285, 0
      %293 = vmatpush.bf16.xpose.msra.mxu0 0
      %294 = vmatpush.bf16.xpose.msra.mxu0 0
      %295 = vmatpush.bf16.xpose.msra.mxu0 0
      %296 = vmatpush.bf16.xpose.msra.mxu0 0
      %297 = vmatpush.bf16.xpose.msra.mxu0 0
      %298 = vmatpush.bf16.xpose.msra.mxu0 0
      %299 = vmatpush.bf16.xpose.msra.mxu0 0
      %300 = vmatpush.bf16.xpose.msra.mxu0 %v291
      %301 = vmatmul.bf16.gmra.mxu0 %v288
      %v302 = vpop.f32.mrf.mxu0
      %v303 = vadd.f32 0.0, %v302
      %v304 = vpop.f32.mrf.mxu0
      %305 = vdwg.mxu0
      %v306 = vsel %vm286, %v303, -inf
      %307 = vmax.xlane.f32.xlu0 %v306
      %v308 = vpop.xlane.xlu0 %307
      %v309 = vsub.f32 %v303, %v308
      %v310 = vmul.f32 %v309, 1.442695
      %v311 = vpow.pop %v310
      %v312 = vsel %vm286, %v311, 0.0
      %313 = vadd.xlane.f32.xlu0 %v312
      %v314 = vpop.xlane.xlu0 %313
      %v315 = vrcp.pop %v314
      %v316 = vmul.f32 %v311, %v315
      %v317 = vpack.c.bf16 %v316, %v316
      %318 = vrot.lane.b32.xlu0 %v282, 64
      %v319 = vpop.permute.xlu0 %318
      %v321 = vsel %vm286, %v317, 0
      %vm323 = vcmask 1043456
      %v325 = vsel %vm323, %v319, 0
      %327 = vmatpush.bf16.msra.mxu0 0
      %328 = vmatpush.bf16.msra.mxu0 0
      %329 = vmatpush.bf16.msra.mxu0 0
      %330 = vmatpush.bf16.msra.mxu0 0
      %331 = vmatpush.bf16.msra.mxu0 0
      %332 = vmatpush.bf16.msra.mxu0 0
      %333 = vmatpush.bf16.msra.mxu0 0
      %334 = vmatpush.bf16.msra.mxu0 %v325
      %335 = vmatmul.bf16.gmra.mxu0 %v321
      %v336 = vpop.f32.mrf.mxu0
      %v337 = vadd.f32 0.0, %v336
      %v338 = vpop.f32.mrf.mxu0
      %339 = vdwg.mxu0
      %340 = vst.msk [vmem:[#allocation2] sm:$0xff] %vm286, %v337
      %342 = vrot.lane.b32.xlu0 %v281, 120
      %v343 = vpop.permute.xlu0 %342
      %344 = vrot.lane.b32.xlu0 %v282, 88
      %v345 = vpop.permute.xlu0 %344
      %v347 = vsel %vm286, %v343, 0
      %v350 = vsel %vm286, %v345, 0
      %352 = vmatpush.bf16.xpose.msra.mxu0 0
      %353 = vmatpush.bf16.xpose.msra.mxu0 0
      %354 = vmatpush.bf16.xpose.msra.mxu0 0
      %355 = vmatpush.bf16.xpose.msra.mxu0 0
      %356 = vmatpush.bf16.xpose.msra.mxu0 0
      %357 = vmatpush.bf16.xpose.msra.mxu0 0
      %358 = vmatpush.bf16.xpose.msra.mxu0 0
      %359 = vmatpush.bf16.xpose.msra.mxu0 %v350
      %360 = vmatmul.bf16.gmra.mxu0 %v347
      %v361 = vpop.f32.mrf.mxu0
      %v362 = vadd.f32 0.0, %v361
      %v363 = vpop.f32.mrf.mxu0
      %364 = vdwg.mxu0
      %v365 = vsel %vm286, %v362, -inf
      %366 = vmax.xlane.f32.xlu0 %v365
      %v367 = vpop.xlane.xlu0 %366
      %v368 = vsub.f32 %v362, %v367
      %v369 = vmul.f32 %v368, 1.442695
      %v370 = vpow.pop %v369
      %v371 = vsel %vm286, %v370, 0.0
      %372 = vadd.xlane.f32.xlu0 %v371
      %v373 = vpop.xlane.xlu0 %372
      %v374 = vrcp.pop %v373
      %v375 = vmul.f32 %v370, %v374
      %v376 = vpack.c.bf16 %v375, %v375
      %377 = vrot.lane.b32.xlu0 %v282, 56
      %v378 = vpop.permute.xlu0 %377
      %v380 = vsel %vm286, %v376, 0
      %v383 = vsel %vm323, %v378, 0
      %385 = vmatpush.bf16.msra.mxu0 0
      %386 = vmatpush.bf16.msra.mxu0 0
      %387 = vmatpush.bf16.msra.mxu0 0
      %388 = vmatpush.bf16.msra.mxu0 0
      %389 = vmatpush.bf16.msra.mxu0 0
      %390 = vmatpush.bf16.msra.mxu0 0
      %391 = vmatpush.bf16.msra.mxu0 0
      %392 = vmatpush.bf16.msra.mxu0 %v383
      %393 = vmatmul.bf16.gmra.mxu0 %v380
      %v394 = vpop.f32.mrf.mxu0
      %v395 = vadd.f32 0.0, %v394
      %v396 = vpop.f32.mrf.mxu0
      %397 = vdwg.mxu0
      %399 = vrot.lane.b32.xlu0 %v395, 8
      %v400 = vpop.permute.xlu0 %399
      %vm402 = vcmask 130112
      %403 = vst.msk [vmem:[#allocation2] sm:$0xff] %vm402, %v400
      %404 = vrot.lane.b32.xlu0 %v281, 112
      %v405 = vpop.permute.xlu0 %404
      %406 = vrot.lane.b32.xlu0 %v282, 80
      %v407 = vpop.permute.xlu0 %406
      %v409 = vsel %vm286, %v405, 0
      %v412 = vsel %vm286, %v407, 0
      %414 = vmatpush.bf16.xpose.msra.mxu0 0
      %415 = vmatpush.bf16.xpose.msra.mxu0 0
      %416 = vmatpush.bf16.xpose.msra.mxu0 0
      %417 = vmatpush.bf16.xpose.msra.mxu0 0
      %418 = vmatpush.bf16.xpose.msra.mxu0 0
      %419 = vmatpush.bf16.xpose.msra.mxu0 0
      %420 = vmatpush.bf16.xpose.msra.mxu0 0
      %421 = vmatpush.bf16.xpose.msra.mxu0 %v412
      %422 = vmatmul.bf16.gmra.mxu0 %v409
      %v423 = vpop.f32.mrf.mxu0
      %v424 = vadd.f32 0.0, %v423
      %v425 = vpop.f32.mrf.mxu0
      %426 = vdwg.mxu0
      %v427 = vsel %vm286, %v424, -inf
      %428 = vmax.xlane.f32.xlu0 %v427
      %v429 = vpop.xlane.xlu0 %428
      %v430 = vsub.f32 %v424, %v429
      %v431 = vmul.f32 %v430, 1.442695
      %v432 = vpow.pop %v431
      %v433 = vsel %vm286, %v432, 0.0
      %434 = vadd.xlane.f32.xlu0 %v433
      %v435 = vpop.xlane.xlu0 %434
      %v436 = vrcp.pop %v435
      %v437 = vmul.f32 %v432, %v436
      %v438 = vpack.c.bf16 %v437, %v437
      %439 = vrot.lane.b32.xlu0 %v282, 48
      %v440 = vpop.permute.xlu0 %439
      %v442 = vsel %vm286, %v438, 0
      %v445 = vsel %vm323, %v440, 0
      %447 = vmatpush.bf16.msra.mxu0 0
      %448 = vmatpush.bf16.msra.mxu0 0
      %449 = vmatpush.bf16.msra.mxu0 0
      %450 = vmatpush.bf16.msra.mxu0 0
      %451 = vmatpush.bf16.msra.mxu0 0
      %452 = vmatpush.bf16.msra.mxu0 0
      %453 = vmatpush.bf16.msra.mxu0 0
      %454 = vmatpush.bf16.msra.mxu0 %v445
      %455 = vmatmul.bf16.gmra.mxu0 %v442
      %v456 = vpop.f32.mrf.mxu0
      %v457 = vadd.f32 0.0, %v456
      %v458 = vpop.f32.mrf.mxu0
      %459 = vdwg.mxu0
      %461 = vrot.lane.b32.xlu0 %v457, 16
      %v462 = vpop.permute.xlu0 %461
      %vm464 = vcmask 195712
      %465 = vst.msk [vmem:[#allocation2] sm:$0xff] %vm464, %v462
      %466 = vrot.lane.b32.xlu0 %v281, 104
      %v467 = vpop.permute.xlu0 %466
      %468 = vrot.lane.b32.xlu0 %v282, 72
      %v469 = vpop.permute.xlu0 %468
      %v471 = vsel %vm286, %v467, 0
      %v474 = vsel %vm286, %v469, 0
      %476 = vmatpush.bf16.xpose.msra.mxu0 0
      %477 = vmatpush.bf16.xpose.msra.mxu0 0
      %478 = vmatpush.bf16.xpose.msra.mxu0 0
      %479 = vmatpush.bf16.xpose.msra.mxu0 0
      %480 = vmatpush.bf16.xpose.msra.mxu0 0
      %481 = vmatpush.bf16.xpose.msra.mxu0 0
      %482 = vmatpush.bf16.xpose.msra.mxu0 0
      %483 = vmatpush.bf16.xpose.msra.mxu0 %v474
      %484 = vmatmul.bf16.gmra.mxu0 %v471
      %v485 = vpop.f32.mrf.mxu0
      %v486 = vadd.f32 0.0, %v485
      %v487 = vpop.f32.mrf.mxu0
      %488 = vdwg.mxu0
      %v489 = vsel %vm286, %v486, -inf
      %490 = vmax.xlane.f32.xlu0 %v489
      %v491 = vpop.xlane.xlu0 %490
      %v492 = vsub.f32 %v486, %v491
      %v493 = vmul.f32 %v492, 1.442695
      %v494 = vpow.pop %v493
      %v495 = vsel %vm286, %v494, 0.0
      %496 = vadd.xlane.f32.xlu0 %v495
      %v497 = vpop.xlane.xlu0 %496
      %v498 = vrcp.pop %v497
      %v499 = vmul.f32 %v494, %v498
      %v500 = vpack.c.bf16 %v499, %v499
      %501 = vrot.lane.b32.xlu0 %v282, 40
      %v502 = vpop.permute.xlu0 %501
      %v504 = vsel %vm286, %v500, 0
      %v507 = vsel %vm323, %v502, 0
      %509 = vmatpush.bf16.msra.mxu0 0
      %510 = vmatpush.bf16.msra.mxu0 0
      %511 = vmatpush.bf16.msra.mxu0 0
      %512 = vmatpush.bf16.msra.mxu0 0
      %513 = vmatpush.bf16.msra.mxu0 0
      %514 = vmatpush.bf16.msra.mxu0 0
      %515 = vmatpush.bf16.msra.mxu0 0
      %516 = vmatpush.bf16.msra.mxu0 %v507
      %517 = vmatmul.bf16.gmra.mxu0 %v504
      %v518 = vpop.f32.mrf.mxu0
      %v519 = vadd.f32 0.0, %v518
      %v520 = vpop.f32.mrf.mxu0
      %521 = vdwg.mxu0
      %523 = vrot.lane.b32.xlu0 %v519, 24
      %v524 = vpop.permute.xlu0 %523
      %vm526 = vcmask 261312
      %527 = vst.msk [vmem:[#allocation2] sm:$0xff] %vm526, %v524
      %v528 = vld [vmem:[#allocation2] sm:$0xff]
      %v529 = vpack.c.bf16 %v528, %v528
      %v530 = vld [vmem:[%s3] sm:$0xff]
      %v531 = vld [vmem:[%s3 + $0x8] sm:$0xff]
      %v532 = vld [vmem:[%s3 + $0x10] sm:$0xff]
      %v533 = vld [vmem:[%s3 + $0x18] sm:$0xff]
      %v534 = vpack.c.bf16 %v531, %v530
      %v535 = vpack.c.bf16 %v533, %v532
      %v536 = vld [vmem:[%s4] sm:$0x1]
      %v538 = vperm.slane %v536, 0
      %v541 = vsel %vm245, %v529, 0
      %v544 = vsel %vm245, %v534, 0
      %v547 = vsel %vm245, %v535, 0
      %549 = vmatpush.bf16.xpose.msra.mxu0 0
      %550 = vmatpush.bf16.xpose.msra.mxu0 0
      %551 = vmatpush.bf16.xpose.msra.mxu0 0
      %552 = vmatpush.bf16.xpose.msra.mxu0 0
      %553 = vmatpush.bf16.xpose.msra.mxu0 0
      %554 = vmatpush.bf16.xpose.msra.mxu0 0
      %555 = vmatpush.bf16.xpose.msra.mxu0 %v547
      %556 = vmatpush.bf16.xpose.msra.mxu0 %v544
      %557 = vmatmul.bf16.gmra.mxu0 %v541
      %v558 = vpop.f32.mrf.mxu0
      %v559 = vadd.f32 %v538, %v558
      %v560 = vpop.f32.mrf.mxu0
      %561 = vdwg.mxu0
      %562 = vst.msk [vmem:[%s219] sm:$0xff] %vm245, %v559
      %p563 = scmp.lt.s32.totalorder %s16, 1
      %s564 = scalar_select %p563, %s16, 1
      %s565 = smul.addr %s564, 8
      %s566 = scalar_lea.vmem %s5, %s565
      // Predicated region
      $region41: #{multi_head_attention.1} parent=39 // pred_check
        %p567 = pneg %p144
      $region42: #{multi_head_attention.1} parent=39 // pred_check_branch
        %569 = sbr.rel (%p567) target = $region44
      $region43: #{multi_head_attention.1} parent=39 // pred_region
        _
      $region44: #{multi_head_attention.1} parent=39 // pred_fallthru
        _
    $region40: #{multi_head_attention.1} parent=5 // pred_fallthru
      _
    %p570 = scmp.le.s32.totalorder 2, %s11
    // Predicated region
    $region45: #{multi_head_attention.1} parent=5 // pred_check
      %p571 = pneg %p570
    $region46: #{multi_head_attention.1} parent=5 // pred_check_branch
      %573 = sbr.rel (%p571) target = $region48
    $region47: #{multi_head_attention.1} parent=5 // pred_region
      %s574 = ssub.s32 %s11, 2
      // Predicated region
      $region49: #{multi_head_attention.1} parent=47 // pred_check
        %p575 = pneg %p150
      $region50: #{multi_head_attention.1} parent=47 // pred_check_branch
        %577 = sbr.rel (%p575) target = $region52
      $region51: #{multi_head_attention.1} parent=47 // pred_region
        %p578 = scmp.lt.s32.totalorder %s17, 1
        %s579 = scalar_select %p578, %s17, 1
        %s580 = smul.addr %s579, 8
        %s581 = scalar_lea.vmem %s5, %s580
      $region52: #{multi_head_attention.1} parent=47 // pred_fallthru
        _
    $region48: #{multi_head_attention.1} parent=5 // pred_fallthru
      _
  $region6: #{multi_head_attention.1} parent=0 // loop_footer
    %s15 = sadd.s32 1, %s11
  $region7: #{multi_head_attention.1} parent=0 // loop_footer_branch
    %10 = sbr.rel target = $region3
  $region8: #{multi_head_attention.1} parent=0 // loop_exit
    _

</llo_original>
